<compile_context>
chip_gen: v5e
topology: v5e:2x2
jax: 0.10.0
libtpu: 0.0.40
codegen_flags: <defaults>
</compile_context>

<pallas_src>
import math
import functools

import jax
import jax.numpy as jnp
from jax.experimental import pallas as pl
from jax.experimental.pallas import tpu as pltpu


def _round_up(x: int, m: int) -> int:
    return ((x + m - 1) // m) * m


def _gru_cell_kernel(x_ref, h_ref, wih_ref, whh_ref, bgi_ref, bhn_ref, out_ref, *, hp):
    """One batch tile of a fused GRU cell.

    x_ref   : [tile, I_pad]      bf16
    h_ref   : [tile, H_pad]      f32 (original hidden dtype)
    wih_ref : [I_pad, 3*H_pad]   bf16   (gate order r, z, n along lanes)
    whh_ref : [H_pad, 3*H_pad]   bf16
    bgi_ref : [1, 3*H_pad]       f32    ([b_ir+b_hr | b_iz+b_hz | b_in])
    bhn_ref : [1, H_pad]         f32    (b_hn)
    out_ref : [tile, H_pad]
    """
    x = x_ref[...]                               # already bf16
    h_f32 = h_ref[...].astype(jnp.float32)
    h_bf16 = h_ref[...].astype(jnp.bfloat16)

    # Two wide MXU matmuls (bf16 operands, f32 accumulation).
    gi = jnp.dot(x, wih_ref[...], preferred_element_type=jnp.float32) + bgi_ref[...]
    gh = jnp.dot(h_bf16, whh_ref[...], preferred_element_type=jnp.float32)

    # Lane-aligned gate slices (hp is a multiple of 128).
    r = jax.nn.sigmoid(gi[:, 0 * hp:1 * hp] + gh[:, 0 * hp:1 * hp])
    z = jax.nn.sigmoid(gi[:, 1 * hp:2 * hp] + gh[:, 1 * hp:2 * hp])
    n = jnp.tanh(gi[:, 2 * hp:3 * hp] + r * (gh[:, 2 * hp:3 * hp] + bhn_ref[...]))

    out_ref[...] = ((1.0 - z) * n + z * h_f32).astype(out_ref.dtype)


@functools.partial(jax.jit, static_argnames=("tile_n",))
def gru_cell_pallas(x, hidden, w_ih_all, w_hh_all, b_gi, b_hn, *, tile_n=256):
    """x: [N, I], hidden: [N, H] -> new hidden [N, H].

    w_ih_all: [I_pad, 3*H_pad] bf16, w_hh_all: [H_pad, 3*H_pad] bf16,
    b_gi: [1, 3*H_pad] f32, b_hn: [1, H_pad] f32.
    """
    N, I = x.shape
    H = hidden.shape[-1]
    I_pad, H3 = w_ih_all.shape
    H_pad = H3 // 3
    assert w_hh_all.shape == (H_pad, 3 * H_pad)
    assert b_gi.shape == (1, 3 * H_pad) and b_hn.shape == (1, H_pad)
    assert I <= I_pad and H <= H_pad

    # Batch tiling: multiple of 16 (bf16 sublane packing); pad N so the grid
    # divides evenly (no masked partial blocks).
    n16 = _round_up(max(N, 1), 16)
    tile = min(max(tile_n, 16), n16)
    tile = _round_up(tile, 16)
    N_pad = _round_up(n16, tile)
    grid = (N_pad // tile,)

    # Zero-pad activations into lane/sublane-dense slabs.
    x_p = jnp.zeros((N_pad, I_pad), jnp.bfloat16).at[:N, :I].set(
        x.astype(jnp.bfloat16))
    h_p = jnp.zeros((N_pad, H_pad), hidden.dtype).at[:N, :H].set(hidden)

    # Scoped-VMEM estimate: resident weights/biases (double-buffered by the
    # pipeline) + double-buffered activation tiles. Only raise the limit when
    # actually needed; cap at 96 MiB.
    # TODO(synk): on v7x (64 MiB physical VMEM) cap lower / tile the 3*H_pad axis.
    weight_bytes = (I_pad + H_pad) * 3 * H_pad * 2          # bf16
    bias_bytes = 4 * H_pad * 4                              # f32
    tile_bytes = tile * (I_pad * 2 + H_pad * 4 + H_pad * 4)  # x bf16, h f32, out f32
    est = 2 * (weight_bytes + bias_bytes + tile_bytes) + (2 << 20)
    vmem_limit = None if est <= (16 << 20) else min(int(est), 96 << 20)

    out_p = pl.pallas_call(
        functools.partial(_gru_cell_kernel, hp=H_pad),
        out_shape=jax.ShapeDtypeStruct((N_pad, H_pad), hidden.dtype),
        grid_spec=pltpu.PrefetchScalarGridSpec(
            num_scalar_prefetch=0,
            grid=grid,
            in_specs=[
                pl.BlockSpec((tile, I_pad), lambda i: (i, 0)),        # x tile
                pl.BlockSpec((tile, H_pad), lambda i: (i, 0)),        # hidden tile
                pl.BlockSpec((I_pad, 3 * H_pad), lambda i: (0, 0)),   # W_ih (resident)
                pl.BlockSpec((H_pad, 3 * H_pad), lambda i: (0, 0)),   # W_hh (resident)
                pl.BlockSpec((1, 3 * H_pad), lambda i: (0, 0)),       # combined bias
                pl.BlockSpec((1, H_pad), lambda i: (0, 0)),           # b_hn
            ],
            out_specs=pl.BlockSpec((tile, H_pad), lambda i: (i, 0)),
        ),
        compiler_params=pltpu.CompilerParams(
            dimension_semantics=("parallel",),
            vmem_limit_bytes=vmem_limit,
        ),
    )(x_p, h_p, w_ih_all, w_hh_all, b_gi, b_hn)

    return out_p[:N, :H]


class GRUNodeUpdaterPallas:
    """Pallas port of GRUNodeUpdater (aggr in {'concat', 'sum'})."""

    def __init__(self, input_size, hidden_size, bias=True, aggr="concat",
                 key=None, tile_n=256):
        assert aggr in ("concat", "sum")
        self.input_size = input_size
        self.hidden_size = hidden_size
        self.aggr = aggr
        self.tile_n = tile_n
        self.I_pad = _round_up(input_size, 128)
        self.H_pad = _round_up(hidden_size, 128)

        if key is None:
            key = jax.random.PRNGKey(0)
        k = 1.0 / math.sqrt(hidden_size)
        k1, k2, k3, k4 = jax.random.split(key, 4)

        # torch.nn.GRUCell init: U(-1/sqrt(H), 1/sqrt(H)); per-gate (r, z, n),
        # stored already transposed so the kernel does x @ W.
        w_ih_g = jax.random.uniform(k1, (3, input_size, hidden_size),
                                    jnp.float32, -k, k)
        w_hh_g = jax.random.uniform(k2, (3, hidden_size, hidden_size),
                                    jnp.float32, -k, k)
        if bias:
            b_ih_g = jax.random.uniform(k3, (3, hidden_size), jnp.float32, -k, k)
            b_hh_g = jax.random.uniform(k4, (3, hidden_size), jnp.float32, -k, k)
        else:
            b_ih_g = jnp.zeros((3, hidden_size), jnp.float32)
            b_hh_g = jnp.zeros((3, hidden_size), jnp.float32)

        Ip, Hp, I, H = self.I_pad, self.H_pad, input_size, hidden_size

        # Fused, zero-padded, bf16 weights: gate g lives at lanes [g*Hp, g*Hp+H).
        W_ih = jnp.zeros((Ip, 3 * Hp), jnp.bfloat16)
        W_hh = jnp.zeros((Hp, 3 * Hp), jnp.bfloat16)
        for g in range(3):
            W_ih = W_ih.at[:I, g * Hp:g * Hp + H].set(w_ih_g[g].astype(jnp.bfloat16))
            W_hh = W_hh.at[:H, g * Hp:g * Hp + H].set(w_hh_g[g].astype(jnp.bfloat16))
        self.W_ih = W_ih
        self.W_hh = W_hh

        # Pre-combined biases: r and z gates can merge input/hidden biases;
        # the n gate keeps b_hn separate (it sits inside r * (...)).
        b_gi = jnp.zeros((1, 3 * Hp), jnp.float32)
        b_gi = b_gi.at[0, 0 * Hp:0 * Hp + H].set(b_ih_g[0] + b_hh_g[0])
        b_gi = b_gi.at[0, 1 * Hp:1 * Hp + H].set(b_ih_g[1] + b_hh_g[1])
        b_gi = b_gi.at[0, 2 * Hp:2 * Hp + H].set(b_ih_g[2])
        self.b_gi = b_gi
        self.b_hn = jnp.zeros((1, Hp), jnp.float32).at[0, :H].set(b_hh_g[2])

    def _aggregate(self, message):
        if self.aggr == "concat":
            if isinstance(message, (list, tuple)):
                return jnp.concatenate(message, axis=-1)
            return message
        # aggr == 'sum'
        if isinstance(message, (list, tuple)):
            # TODO(synk): torch.sum(list, dim=-1) is ill-defined; element-wise sum here.
            return functools.reduce(lambda a, b: a + b, message)
        return jnp.sum(message, axis=-1)

    def __call__(self, message, hidden):
        msg = self._aggregate(message)
        assert msg.shape[-1] == self.input_size
        return gru_cell_pallas(msg, hidden, self.W_ih, self.W_hh,
                               self.b_gi, self.b_hn, tile_n=self.tile_n)

    def reference(self, message, hidden):
        """Plain-JAX reference with identical (bf16-operand) numerics."""
        msg = self._aggregate(message)
        N, I = msg.shape
        H, Ip, Hp = self.hidden_size, self.I_pad, self.H_pad
        x_p = jnp.zeros((N, Ip), jnp.bfloat16).at[:, :I].set(msg.astype(jnp.bfloat16))
        h_p = jnp.zeros((N, Hp), jnp.float32).at[:, :H].set(hidden.astype(jnp.float32))
        gi = jnp.dot(x_p, self.W_ih, preferred_element_type=jnp.float32) + self.b_gi
        gh = jnp.dot(h_p.astype(jnp.bfloat16), self.W_hh,
                     preferred_element_type=jnp.float32)
        r = jax.nn.sigmoid(gi[:, 0 * Hp:1 * Hp] + gh[:, 0 * Hp:1 * Hp])
        z = jax.nn.sigmoid(gi[:, 1 * Hp:2 * Hp] + gh[:, 1 * Hp:2 * Hp])
        n = jnp.tanh(gi[:, 2 * Hp:3 * Hp] + r * (gh[:, 2 * Hp:3 * Hp] + self.b_hn))
        return ((1.0 - z) * n + z * h_p)[:, :H].astype(hidden.dtype)


if __name__ == "__main__":
    key = jax.random.PRNGKey(0)
    k_msg0, k_msg1, k_hid, k_param = jax.random.split(key, 4)

    batch = 8
    hidden_size = 32
    msg_dim = 32
    num_messages = 2
    input_size = num_messages * msg_dim  # concat aggregation

    message = [
        jax.random.normal(k_msg0, (batch, msg_dim), jnp.float32),
        jax.random.normal(k_msg1, (batch, msg_dim), jnp.float32),
    ]
    hidden = jax.random.normal(k_hid, (batch, hidden_size), jnp.float32)

    updater = GRUNodeUpdaterPallas(input_size, hidden_size, bias=True,
                                   aggr="concat", key=k_param)

    out = updater(message, hidden)
    out = jax.block_until_ready(out)

    ref = updater.reference(message, hidden)
    assert out.shape == (batch, hidden_size)
    assert jnp.allclose(out, ref, atol=5e-4, rtol=5e-4), "mismatch vs reference"

    print("KERNEL_OK")
</pallas_src>

<mosaic_0001>
module attributes {stable_mosaic.version = 11 : i64} {
  func.func @_gru_cell_kernel(%arg0: i32, %arg1: memref<16x128xbf16, #tpu.memory_space<vmem>>, %arg2: memref<16x128xf32, #tpu.memory_space<vmem>>, %arg3: memref<128x384xbf16, #tpu.memory_space<vmem>>, %arg4: memref<128x384xbf16, #tpu.memory_space<vmem>>, %arg5: memref<1x384xf32, #tpu.memory_space<vmem>>, %arg6: memref<1x128xf32, #tpu.memory_space<vmem>>, %arg7: memref<16x128xf32, #tpu.memory_space<vmem>>) attributes {dimension_semantics = [#tpu.dimension_semantics<parallel>], iteration_bounds = array<i64: 1>, scalar_prefetch = 0 : i64, scratch_operands = 0 : i64, tpu.core_type = #tpu.core_type<tc>, window_params = [{transform_indices = @transform_0, window_bounds = array<i64: 16, 128>}, {transform_indices = @transform_1, window_bounds = array<i64: 16, 128>}, {pipeline_mode = #tpu.pipeline_mode<synchronous>, transform_indices = @transform_2, window_bounds = array<i64: 128, 384>}, {pipeline_mode = #tpu.pipeline_mode<synchronous>, transform_indices = @transform_3, window_bounds = array<i64: 128, 384>}, {pipeline_mode = #tpu.pipeline_mode<synchronous>, transform_indices = @transform_4, window_bounds = array<i64: 1, 384>}, {pipeline_mode = #tpu.pipeline_mode<synchronous>, transform_indices = @transform_5, window_bounds = array<i64: 1, 128>}, {transform_indices = @transform_6, window_bounds = array<i64: 16, 128>}]} {
    %c0 = arith.constant 0 : index
    %c0_0 = arith.constant 0 : index
    %0 = vector.load %arg1[%c0, %c0_0] : memref<16x128xbf16, #tpu.memory_space<vmem>>, vector<16x128xbf16>
    %c0_1 = arith.constant 0 : index
    %c0_2 = arith.constant 0 : index
    %1 = vector.load %arg2[%c0_1, %c0_2] : memref<16x128xf32, #tpu.memory_space<vmem>>, vector<16x128xf32>
    %c0_3 = arith.constant 0 : index
    %c0_4 = arith.constant 0 : index
    %2 = vector.load %arg2[%c0_3, %c0_4] : memref<16x128xf32, #tpu.memory_space<vmem>>, vector<16x128xf32>
    %3 = arith.truncf %2 : vector<16x128xf32> to vector<16x128xbf16>
    %c0_5 = arith.constant 0 : index
    %c0_6 = arith.constant 0 : index
    %4 = vector.load %arg3[%c0_5, %c0_6] : memref<128x384xbf16, #tpu.memory_space<vmem>>, vector<128x384xbf16>
    %cst = arith.constant dense<0.000000e+00> : vector<16x384xf32>
    %5 = tpu.matmul %0, %4, %cst {dimension_numbers = #tpu.dot_dimension_numbers<[1], [0], [0], [1], [0, 0, 1, 1], [], []>} : vector<16x128xbf16>, vector<128x384xbf16>, vector<16x384xf32> -> vector<16x384xf32>
    %c0_7 = arith.constant 0 : index
    %c0_8 = arith.constant 0 : index
    %6 = vector.load %arg5[%c0_7, %c0_8] : memref<1x384xf32, #tpu.memory_space<vmem>>, vector<1x384xf32>
    %7 = vector.broadcast %6 : vector<1x384xf32> to vector<16x384xf32>
    %8 = arith.addf %5, %7 : vector<16x384xf32>
    %c0_9 = arith.constant 0 : index
    %c0_10 = arith.constant 0 : index
    %9 = vector.load %arg4[%c0_9, %c0_10] : memref<128x384xbf16, #tpu.memory_space<vmem>>, vector<128x384xbf16>
    %cst_11 = arith.constant dense<0.000000e+00> : vector<16x384xf32>
    %10 = tpu.matmul %3, %9, %cst_11 {dimension_numbers = #tpu.dot_dimension_numbers<[1], [0], [0], [1], [0, 0, 1, 1], [], []>} : vector<16x128xbf16>, vector<128x384xbf16>, vector<16x384xf32> -> vector<16x384xf32>
    %11 = vector.extract_strided_slice %8 {offsets = [0, 0], sizes = [16, 128], strides = [1, 1]} : vector<16x384xf32> to vector<16x128xf32>
    %12 = vector.extract_strided_slice %10 {offsets = [0, 0], sizes = [16, 128], strides = [1, 1]} : vector<16x384xf32> to vector<16x128xf32>
    %13 = arith.addf %11, %12 : vector<16x128xf32>
    %14 = arith.negf %13 : vector<16x128xf32>
    %15 = math.exp %14 : vector<16x128xf32>
    %cst_12 = arith.constant 1.000000e+00 : f32
    %16 = vector.broadcast %cst_12 : f32 to vector<16x128xf32>
    %17 = arith.addf %16, %15 : vector<16x128xf32>
    %18 = arith.divf %16, %17 : vector<16x128xf32>
    %19 = vector.extract_strided_slice %8 {offsets = [0, 128], sizes = [16, 128], strides = [1, 1]} : vector<16x384xf32> to vector<16x128xf32>
    %20 = vector.extract_strided_slice %10 {offsets = [0, 128], sizes = [16, 128], strides = [1, 1]} : vector<16x384xf32> to vector<16x128xf32>
    %21 = arith.addf %19, %20 : vector<16x128xf32>
    %22 = arith.negf %21 : vector<16x128xf32>
    %23 = math.exp %22 : vector<16x128xf32>
    %cst_13 = arith.constant 1.000000e+00 : f32
    %24 = vector.broadcast %cst_13 : f32 to vector<16x128xf32>
    %25 = arith.addf %24, %23 : vector<16x128xf32>
    %26 = arith.divf %24, %25 : vector<16x128xf32>
    %27 = vector.extract_strided_slice %8 {offsets = [0, 256], sizes = [16, 128], strides = [1, 1]} : vector<16x384xf32> to vector<16x128xf32>
    %28 = vector.extract_strided_slice %10 {offsets = [0, 256], sizes = [16, 128], strides = [1, 1]} : vector<16x384xf32> to vector<16x128xf32>
    %c0_14 = arith.constant 0 : index
    %c0_15 = arith.constant 0 : index
    %29 = vector.load %arg6[%c0_14, %c0_15] : memref<1x128xf32, #tpu.memory_space<vmem>>, vector<1x128xf32>
    %30 = vector.broadcast %29 : vector<1x128xf32> to vector<16x128xf32>
    %31 = arith.addf %28, %30 : vector<16x128xf32>
    %32 = arith.mulf %18, %31 : vector<16x128xf32>
    %33 = arith.addf %27, %32 : vector<16x128xf32>
    %34 = math.tanh %33 : vector<16x128xf32>
    %cst_16 = arith.constant 1.000000e+00 : f32
    %35 = vector.broadcast %cst_16 : f32 to vector<16x128xf32>
    %36 = arith.subf %35, %26 : vector<16x128xf32>
    %37 = arith.mulf %36, %34 : vector<16x128xf32>
    %38 = arith.mulf %26, %1 : vector<16x128xf32>
    %39 = arith.addf %37, %38 : vector<16x128xf32>
    %c0_17 = arith.constant 0 : index
    %c0_18 = arith.constant 0 : index
    %40 = vector.load %arg7[%c0_17, %c0_18] : memref<16x128xf32, #tpu.memory_space<vmem>>, vector<16x128xf32>
    tpu.vector_store %arg7[%c0_17, %c0_18], %39 {strides = array<i32>} : memref<16x128xf32, #tpu.memory_space<vmem>>, vector<16x128xf32>,
    return
  }
  func.func @transform_0(%arg0: i32) -> (i32, i32) {
    %c0_i32 = arith.constant 0 : i32
    %c0_i32_0 = arith.constant 0 : i32
    return %arg0, %c0_i32 : i32, i32
  }
  func.func @transform_1(%arg0: i32) -> (i32, i32) {
    %c0_i32 = arith.constant 0 : i32
    %c0_i32_0 = arith.constant 0 : i32
    return %arg0, %c0_i32 : i32, i32
  }
  func.func @transform_2(%arg0: i32) -> (i32, i32) {
    %c0_i32 = arith.constant 0 : i32
    %c0_i32_0 = arith.constant 0 : i32
    %c0_i32_1 = arith.constant 0 : i32
    return %c0_i32, %c0_i32_0 : i32, i32
  }
  func.func @transform_3(%arg0: i32) -> (i32, i32) {
    %c0_i32 = arith.constant 0 : i32
    %c0_i32_0 = arith.constant 0 : i32
    %c0_i32_1 = arith.constant 0 : i32
    return %c0_i32, %c0_i32_0 : i32, i32
  }
  func.func @transform_4(%arg0: i32) -> (i32, i32) {
    %c0_i32 = arith.constant 0 : i32
    %c0_i32_0 = arith.constant 0 : i32
    %c0_i32_1 = arith.constant 0 : i32
    return %c0_i32, %c0_i32_0 : i32, i32
  }
  func.func @transform_5(%arg0: i32) -> (i32, i32) {
    %c0_i32 = arith.constant 0 : i32
    %c0_i32_0 = arith.constant 0 : i32
    %c0_i32_1 = arith.constant 0 : i32
    return %c0_i32, %c0_i32_0 : i32, i32
  }
  func.func @transform_6(%arg0: i32) -> (i32, i32) {
    %c0_i32 = arith.constant 0 : i32
    %c0_i32_0 = arith.constant 0 : i32
    return %arg0, %c0_i32 : i32, i32
  }
}

</mosaic_0001>

<llo_original>
// kernel: gru_cell_pallas.1
$region0: #{gru_cell_pallas.1}
  #allocation0 [shape = 'u32[]', space=smem, size = 0x4, offset = 0x4, fixed_abs, tag = 'smem constant byte address 0x4 - core index']
  #allocation1 [shape = 'u32[72,128]{1,0:T(1,128)}', space=vmem, size = 0x9000, scoped, tag = 'internal scratch']
  %s0 = inlined_call_operand.vmem [shape: bf16[16,128], index: 0, kind: input, shape index: {}]
  %s1 = inlined_call_operand.vmem [shape: f32[16,128], index: 1, kind: input, shape index: {}]
  %s2 = inlined_call_operand.hbm [shape: bf16[128,384], index: 2, kind: input, shape index: {}]
  %s3 = inlined_call_operand.hbm [shape: bf16[128,384], index: 3, kind: input, shape index: {}]
  %s4 = inlined_call_operand.vmem [shape: f32[1,384], index: 4, kind: input, shape index: {}]
  %s5 = inlined_call_operand.vmem [shape: f32[1,128], index: 5, kind: input, shape index: {}]
  %s6 = inlined_call_operand.vmem [shape: f32[16,128], index: 6, kind: output, shape index: {}]
  %s7 = sld [smem:[#allocation0]]
  $region42: #{gru_cell_pallas.1} parent=0
    _
  %s9 = ssub.s32 1, %s7
  %s10 = scalar_select 0, %s9, %s7
  $region1: #{gru_cell_pallas.1} parent=0
    #allocation2 [shape = 'u8[98304]{0}', space=vmem, size = 0x18000, scoped, tag = 'input window, operand 2, single buffered']
    #allocation3 [shape = 's32[1]{0}', space=sflag, size = 0x4, scoped, tag = 'scoped memory for gru_cell_pallas.1']
    #allocation4 [shape = 'u8[98304]{0}', space=vmem, size = 0x18000, scoped, tag = 'input window, operand 3, single buffered']
    #allocation5 [shape = 's32[1]{0}', space=sflag, size = 0x4, scoped, tag = 'scoped memory for gru_cell_pallas.1']
    %11 = vsyncpa [#allocation3], 0
    %12 = vsyncpa [#allocation5], 0
    // Predicated region
    $region2: #{gru_cell_pallas.1} parent=1 // pred_check
      _
    $region3: #{gru_cell_pallas.1} parent=1 // pred_check_branch
      %14 = sbr.rel (0) target = $region5
    $region4: #{gru_cell_pallas.1} parent=1 // pred_region
      _
    $region5: #{gru_cell_pallas.1} parent=1 // pred_fallthru
      _
    // Predicated region
    $region6: #{gru_cell_pallas.1} parent=1 // pred_check
      _
    $region7: #{gru_cell_pallas.1} parent=1 // pred_check_branch
      %16 = sbr.rel (0) target = $region9
    $region8: #{gru_cell_pallas.1} parent=1 // pred_region
      _
    $region9: #{gru_cell_pallas.1} parent=1 // pred_fallthru
      _
    // Predicated region
    $region10: #{gru_cell_pallas.1} parent=1 // pred_check
      _
    $region11: #{gru_cell_pallas.1} parent=1 // pred_check_branch
      %18 = sbr.rel (0) target = $region13
    $region12: #{gru_cell_pallas.1} parent=1 // pred_region
      %20 = vsyncadd [#allocation3], 0
      %s21 = sshll.u32 %s2, 4
      %s22 = int_to_ptr.hbm [resolvable:$true] %s21
      %s23 = sshll.u32 [#allocation2], 4
      %s24 = int_to_ptr.vmem [resolvable:$true] %s23
      %29 = dma.hbm_to_vmem [thread:$0]  %s22, 3072, %s24, [#allocation3], 192, 192, 12
    $region13: #{gru_cell_pallas.1} parent=1 // pred_fallthru
      _
    // Predicated region
    $region14: #{gru_cell_pallas.1} parent=1 // pred_check
      _
    $region15: #{gru_cell_pallas.1} parent=1 // pred_check_branch
      %31 = sbr.rel (0) target = $region17
    $region16: #{gru_cell_pallas.1} parent=1 // pred_region
      %33 = vsyncadd [#allocation5], 0
      %s34 = sshll.u32 %s3, 4
      %s35 = int_to_ptr.hbm [resolvable:$true] %s34
      %s36 = sshll.u32 [#allocation4], 4
      %s37 = int_to_ptr.vmem [resolvable:$true] %s36
      %42 = dma.hbm_to_vmem [thread:$0]  %s35, 3072, %s37, [#allocation5], 192, 192, 12
    $region17: #{gru_cell_pallas.1} parent=1 // pred_fallthru
      _
    // Predicated region
    $region18: #{gru_cell_pallas.1} parent=1 // pred_check
      _
    $region19: #{gru_cell_pallas.1} parent=1 // pred_check_branch
      %44 = sbr.rel (0) target = $region21
    $region20: #{gru_cell_pallas.1} parent=1 // pred_region
      _
    $region21: #{gru_cell_pallas.1} parent=1 // pred_fallthru
      _
    // Predicated region
    $region22: #{gru_cell_pallas.1} parent=1 // pred_check
      _
    $region23: #{gru_cell_pallas.1} parent=1 // pred_check_branch
      %46 = sbr.rel (0) target = $region25
    $region24: #{gru_cell_pallas.1} parent=1 // pred_region
      _
    $region25: #{gru_cell_pallas.1} parent=1 // pred_fallthru
      _
    // Predicated region
    $region26: #{gru_cell_pallas.1} parent=1 // pred_check
      _
    $region27: #{gru_cell_pallas.1} parent=1 // pred_check_branch
      %48 = sbr.rel (0) target = $region29
    $region28: #{gru_cell_pallas.1} parent=1 // pred_region
      %50 = dma.done [#allocation3], 3072
    $region29: #{gru_cell_pallas.1} parent=1 // pred_fallthru
      _
    // Predicated region
    $region30: #{gru_cell_pallas.1} parent=1 // pred_check
      _
    $region31: #{gru_cell_pallas.1} parent=1 // pred_check_branch
      %52 = sbr.rel (0) target = $region33
    $region32: #{gru_cell_pallas.1} parent=1 // pred_region
      %54 = dma.done [#allocation5], 3072
    $region33: #{gru_cell_pallas.1} parent=1 // pred_fallthru
      _
    %v55 = vld [vmem:[%s0] sm:$0xf]
    %v56 = vld [vmem:[%s0 + $0x4] sm:$0xf]
    %v57 = vld [vmem:[%s1] sm:$0xff]
    %v58 = vld [vmem:[%s1 + $0x8] sm:$0xff]
    %v59 = vpack.c.bf16 %v58, %v57
    %v60 = vld [vmem:[#allocation2] sm:$0xff]
    %v61 = vld [vmem:[#allocation2 + $0x8] sm:$0xf]
    %v62 = vld [vmem:[#allocation2 + $0xc] sm:$0xff]
    %v63 = vld [vmem:[#allocation2 + $0x14] sm:$0xf]
    %v64 = vld [vmem:[#allocation2 + $0x18] sm:$0xff]
    %v65 = vld [vmem:[#allocation2 + $0x20] sm:$0xf]
    %v66 = vld [vmem:[#allocation2 + $0x24] sm:$0xff]
    %v67 = vld [vmem:[#allocation2 + $0x2c] sm:$0xf]
    %v68 = vld [vmem:[#allocation2 + $0x30] sm:$0xff]
    %v69 = vld [vmem:[#allocation2 + $0x38] sm:$0xf]
    %v70 = vld [vmem:[#allocation2 + $0x3c] sm:$0xff]
    %v71 = vld [vmem:[#allocation2 + $0x44] sm:$0xf]
    %v72 = vld [vmem:[#allocation2 + $0x48] sm:$0xff]
    %v73 = vld [vmem:[#allocation2 + $0x50] sm:$0xf]
    %v74 = vld [vmem:[#allocation2 + $0x54] sm:$0xff]
    %v75 = vld [vmem:[#allocation2 + $0x5c] sm:$0xf]
    %v76 = vld [vmem:[#allocation2 + $0x60] sm:$0xff]
    %v77 = vld [vmem:[#allocation2 + $0x68] sm:$0xf]
    %v78 = vld [vmem:[#allocation2 + $0x6c] sm:$0xff]
    %v79 = vld [vmem:[#allocation2 + $0x74] sm:$0xf]
    %v80 = vld [vmem:[#allocation2 + $0x78] sm:$0xff]
    %v81 = vld [vmem:[#allocation2 + $0x80] sm:$0xf]
    %v82 = vld [vmem:[#allocation2 + $0x84] sm:$0xff]
    %v83 = vld [vmem:[#allocation2 + $0x8c] sm:$0xf]
    %v84 = vld [vmem:[#allocation2 + $0x90] sm:$0xff]
    %v85 = vld [vmem:[#allocation2 + $0x98] sm:$0xf]
    %v86 = vld [vmem:[#allocation2 + $0x9c] sm:$0xff]
    %v87 = vld [vmem:[#allocation2 + $0xa4] sm:$0xf]
    %v88 = vld [vmem:[#allocation2 + $0xa8] sm:$0xff]
    %v89 = vld [vmem:[#allocation2 + $0xb0] sm:$0xf]
    %v90 = vld [vmem:[#allocation2 + $0xb4] sm:$0xff]
    %v91 = vld [vmem:[#allocation2 + $0xbc] sm:$0xf]
    %v92 = vld [vmem:[%s4] sm:$0x7]
    %v94 = vperm.slane %v92, 0
    %v95 = vperm.slane %v92, 1
    %v96 = vperm.slane %v92, 2
    %v102 = vunpack.c.l.b16 %v55
    %v103 = vunpack.c.l.b16 %v56
    %v104 = vpack.c.b16 %v103, %v102
    %v138 = vunpack.c.l.b16 %v60
    %v139 = vunpack.c.h.b16 %v60
    %v140 = vunpack.c.l.b16 %v61
    %v141 = vunpack.c.l.b16 %v62
    %v142 = vunpack.c.h.b16 %v62
    %v143 = vunpack.c.l.b16 %v63
    %v144 = vunpack.c.l.b16 %v64
    %v145 = vunpack.c.h.b16 %v64
    %v146 = vunpack.c.l.b16 %v65
    %v147 = vunpack.c.l.b16 %v66
    %v148 = vunpack.c.h.b16 %v66
    %v149 = vunpack.c.l.b16 %v67
    %v150 = vunpack.c.l.b16 %v68
    %v151 = vunpack.c.h.b16 %v68
    %v152 = vunpack.c.l.b16 %v69
    %v153 = vunpack.c.l.b16 %v70
    %v154 = vunpack.c.h.b16 %v70
    %v155 = vunpack.c.l.b16 %v71
    %v156 = vunpack.c.l.b16 %v72
    %v157 = vunpack.c.h.b16 %v72
    %v158 = vunpack.c.l.b16 %v73
    %v159 = vunpack.c.l.b16 %v74
    %v160 = vunpack.c.h.b16 %v74
    %v161 = vunpack.c.l.b16 %v75
    %v162 = vunpack.c.l.b16 %v76
    %v163 = vunpack.c.h.b16 %v76
    %v164 = vunpack.c.l.b16 %v77
    %v165 = vunpack.c.l.b16 %v78
    %v166 = vunpack.c.h.b16 %v78
    %v167 = vunpack.c.l.b16 %v79
    %v168 = vunpack.c.l.b16 %v80
    %v169 = vunpack.c.h.b16 %v80
    %v170 = vunpack.c.l.b16 %v81
    %v171 = vunpack.c.l.b16 %v82
    %v172 = vunpack.c.h.b16 %v82
    %v173 = vunpack.c.l.b16 %v83
    %v174 = vunpack.c.l.b16 %v84
    %v175 = vunpack.c.h.b16 %v84
    %v176 = vunpack.c.l.b16 %v85
    %v177 = vunpack.c.l.b16 %v86
    %v178 = vunpack.c.h.b16 %v86
    %v179 = vunpack.c.l.b16 %v87
    %v180 = vunpack.c.l.b16 %v88
    %v181 = vunpack.c.h.b16 %v88
    %v182 = vunpack.c.l.b16 %v89
    %v183 = vunpack.c.l.b16 %v90
    %v184 = vunpack.c.h.b16 %v90
    %v185 = vunpack.c.l.b16 %v91
    %v186 = vpack.c.b16 %v141, %v138
    %v187 = vpack.c.b16 %v142, %v139
    %v188 = vpack.c.b16 %v143, %v140
    %v189 = vpack.c.b16 %v147, %v144
    %v190 = vpack.c.b16 %v148, %v145
    %v191 = vpack.c.b16 %v149, %v146
    %v192 = vpack.c.b16 %v153, %v150
    %v193 = vpack.c.b16 %v154, %v151
    %v194 = vpack.c.b16 %v155, %v152
    %v195 = vpack.c.b16 %v159, %v156
    %v196 = vpack.c.b16 %v160, %v157
    %v197 = vpack.c.b16 %v161, %v158
    %v198 = vpack.c.b16 %v165, %v162
    %v199 = vpack.c.b16 %v166, %v163
    %v200 = vpack.c.b16 %v167, %v164
    %v201 = vpack.c.b16 %v171, %v168
    %v202 = vpack.c.b16 %v172, %v169
    %v203 = vpack.c.b16 %v173, %v170
    %v204 = vpack.c.b16 %v177, %v174
    %v205 = vpack.c.b16 %v178, %v175
    %v206 = vpack.c.b16 %v179, %v176
    %v207 = vpack.c.b16 %v183, %v180
    %v208 = vpack.c.b16 %v184, %v181
    %v209 = vpack.c.b16 %v185, %v182
    %234 = vmatpush.bf16.msra.mxu0 %v207
    %235 = vmatpush.bf16.msra.mxu0 %v204
    %236 = vmatpush.bf16.msra.mxu0 %v201
    %237 = vmatpush.bf16.msra.mxu0 %v198
    %238 = vmatpush.bf16.msra.mxu0 %v195
    %239 = vmatpush.bf16.msra.mxu0 %v192
    %240 = vmatpush.bf16.msra.mxu0 %v189
    %241 = vmatpush.bf16.msra.mxu0 %v186
    %242 = vmatmul.bf16.gmra.mxu0 %v104
    %v243 = vpop.f32.mrf.mxu0
    %v244 = vadd.f32 %v94, %v243
    %v245 = vpop.f32.mrf.mxu0
    %v246 = vadd.f32 %v94, %v245
    %247 = vdwg.mxu0
    %248 = vmatpush.bf16.msra.mxu0 %v208
    %249 = vmatpush.bf16.msra.mxu0 %v205
    %250 = vmatpush.bf16.msra.mxu0 %v202
    %251 = vmatpush.bf16.msra.mxu0 %v199
    %252 = vmatpush.bf16.msra.mxu0 %v196
    %253 = vmatpush.bf16.msra.mxu0 %v193
    %254 = vmatpush.bf16.msra.mxu0 %v190
    %255 = vmatpush.bf16.msra.mxu0 %v187
    %256 = vmatmul.bf16.gmra.mxu0 %v104
    %v257 = vpop.f32.mrf.mxu0
    %v258 = vadd.f32 %v95, %v257
    %v259 = vpop.f32.mrf.mxu0
    %v260 = vadd.f32 %v95, %v259
    %261 = vdwg.mxu0
    %262 = vmatpush.bf16.msra.mxu0 %v209
    %263 = vmatpush.bf16.msra.mxu0 %v206
    %264 = vmatpush.bf16.msra.mxu0 %v203
    %265 = vmatpush.bf16.msra.mxu0 %v200
    %266 = vmatpush.bf16.msra.mxu0 %v197
    %267 = vmatpush.bf16.msra.mxu0 %v194
    %268 = vmatpush.bf16.msra.mxu0 %v191
    %269 = vmatpush.bf16.msra.mxu0 %v188
    %270 = vmatmul.bf16.gmra.mxu0 %v104
    %v271 = vpop.f32.mrf.mxu0
    %v272 = vadd.f32 %v96, %v271
    %v273 = vpop.f32.mrf.mxu0
    %v274 = vadd.f32 %v96, %v273
    %275 = vdwg.mxu0
    %v276 = vld [vmem:[#allocation4] sm:$0xff]
    %v277 = vld [vmem:[#allocation4 + $0x8] sm:$0xf]
    %v278 = vld [vmem:[#allocation4 + $0xc] sm:$0xff]
    %v279 = vld [vmem:[#allocation4 + $0x14] sm:$0xf]
    %v280 = vld [vmem:[#allocation4 + $0x18] sm:$0xff]
    %v281 = vld [vmem:[#allocation4 + $0x20] sm:$0xf]
    %v282 = vld [vmem:[#allocation4 + $0x24] sm:$0xff]
    %v283 = vld [vmem:[#allocation4 + $0x2c] sm:$0xf]
    %v284 = vld [vmem:[#allocation4 + $0x30] sm:$0xff]
    %v285 = vld [vmem:[#allocation4 + $0x38] sm:$0xf]
    %v286 = vld [vmem:[#allocation4 + $0x3c] sm:$0xff]
    %v287 = vld [vmem:[#allocation4 + $0x44] sm:$0xf]
    %v288 = vld [vmem:[#allocation4 + $0x48] sm:$0xff]
    %v289 = vld [vmem:[#allocation4 + $0x50] sm:$0xf]
    %v290 = vld [vmem:[#allocation4 + $0x54] sm:$0xff]
    %v291 = vld [vmem:[#allocation4 + $0x5c] sm:$0xf]
    %v292 = vld [vmem:[#allocation4 + $0x60] sm:$0xff]
    %v293 = vld [vmem:[#allocation4 + $0x68] sm:$0xf]
    %v294 = vld [vmem:[#allocation4 + $0x6c] sm:$0xff]
    %v295 = vld [vmem:[#allocation4 + $0x74] sm:$0xf]
    %v296 = vld [vmem:[#allocation4 + $0x78] sm:$0xff]
    %v297 = vld [vmem:[#allocation4 + $0x80] sm:$0xf]
    %v298 = vld [vmem:[#allocation4 + $0x84] sm:$0xff]
    %v299 = vld [vmem:[#allocation4 + $0x8c] sm:$0xf]
    %v300 = vld [vmem:[#allocation4 + $0x90] sm:$0xff]
    %v301 = vld [vmem:[#allocation4 + $0x98] sm:$0xf]
    %v302 = vld [vmem:[#allocation4 + $0x9c] sm:$0xff]
    %v303 = vld [vmem:[#allocation4 + $0xa4] sm:$0xf]
    %v304 = vld [vmem:[#allocation4 + $0xa8] sm:$0xff]
    %v305 = vld [vmem:[#allocation4 + $0xb0] sm:$0xf]
    %v306 = vld [vmem:[#allocation4 + $0xb4] sm:$0xff]
    %v307 = vld [vmem:[#allocation4 + $0xbc] sm:$0xf]
    %v340 = vunpack.c.l.b16 %v276
    %v341 = vunpack.c.h.b16 %v276
    %v342 = vunpack.c.l.b16 %v277
    %v343 = vunpack.c.l.b16 %v278
    %v344 = vunpack.c.h.b16 %v278
    %v345 = vunpack.c.l.b16 %v279
    %v346 = vunpack.c.l.b16 %v280
    %v347 = vunpack.c.h.b16 %v280
    %v348 = vunpack.c.l.b16 %v281
    %v349 = vunpack.c.l.b16 %v282
    %v350 = vunpack.c.h.b16 %v282
    %v351 = vunpack.c.l.b16 %v283
    %v352 = vunpack.c.l.b16 %v284
    %v353 = vunpack.c.h.b16 %v284
    %v354 = vunpack.c.l.b16 %v285
    %v355 = vunpack.c.l.b16 %v286
    %v356 = vunpack.c.h.b16 %v286
    %v357 = vunpack.c.l.b16 %v287
    %v358 = vunpack.c.l.b16 %v288
    %v359 = vunpack.c.h.b16 %v288
    %v360 = vunpack.c.l.b16 %v289
    %v361 = vunpack.c.l.b16 %v290
    %v362 = vunpack.c.h.b16 %v290
    %v363 = vunpack.c.l.b16 %v291
    %v364 = vunpack.c.l.b16 %v292
    %v365 = vunpack.c.h.b16 %v292
    %v366 = vunpack.c.l.b16 %v293
    %v367 = vunpack.c.l.b16 %v294
    %v368 = vunpack.c.h.b16 %v294
    %v369 = vunpack.c.l.b16 %v295
    %v370 = vunpack.c.l.b16 %v296
    %v371 = vunpack.c.h.b16 %v296
    %v372 = vunpack.c.l.b16 %v297
    %v373 = vunpack.c.l.b16 %v298
    %v374 = vunpack.c.h.b16 %v298
    %v375 = vunpack.c.l.b16 %v299
    %v376 = vunpack.c.l.b16 %v300
    %v377 = vunpack.c.h.b16 %v300
    %v378 = vunpack.c.l.b16 %v301
    %v379 = vunpack.c.l.b16 %v302
    %v380 = vunpack.c.h.b16 %v302
    %v381 = vunpack.c.l.b16 %v303
    %v382 = vunpack.c.l.b16 %v304
    %v383 = vunpack.c.h.b16 %v304
    %v384 = vunpack.c.l.b16 %v305
    %v385 = vunpack.c.l.b16 %v306
    %v386 = vunpack.c.h.b16 %v306
    %v387 = vunpack.c.l.b16 %v307
    %v388 = vpack.c.b16 %v343, %v340
    %v389 = vpack.c.b16 %v344, %v341
    %v390 = vpack.c.b16 %v345, %v342
    %v391 = vpack.c.b16 %v349, %v346
    %v392 = vpack.c.b16 %v350, %v347
    %v393 = vpack.c.b16 %v351, %v348
    %v394 = vpack.c.b16 %v355, %v352
    %v395 = vpack.c.b16 %v356, %v353
    %v396 = vpack.c.b16 %v357, %v354
    %v397 = vpack.c.b16 %v361, %v358
    %v398 = vpack.c.b16 %v362, %v359
    %v399 = vpack.c.b16 %v363, %v360
    %v400 = vpack.c.b16 %v367, %v364
    %v401 = vpack.c.b16 %v368, %v365
    %v402 = vpack.c.b16 %v369, %v366
    %v403 = vpack.c.b16 %v373, %v370
    %v404 = vpack.c.b16 %v374, %v371
    %v405 = vpack.c.b16 %v375, %v372
    %v406 = vpack.c.b16 %v379, %v376
    %v407 = vpack.c.b16 %v380, %v377
    %v408 = vpack.c.b16 %v381, %v378
    %v409 = vpack.c.b16 %v385, %v382
    %v410 = vpack.c.b16 %v386, %v383
    %v411 = vpack.c.b16 %v387, %v384
    %436 = vmatpush.bf16.msra.mxu0 %v409
    %437 = vmatpush.bf16.msra.mxu0 %v406
    %438 = vmatpush.bf16.msra.mxu0 %v403
    %439 = vmatpush.bf16.msra.mxu0 %v400
    %440 = vmatpush.bf16.msra.mxu0 %v397
    %441 = vmatpush.bf16.msra.mxu0 %v394
    %442 = vmatpush.bf16.msra.mxu0 %v391
    %443 = vmatpush.bf16.msra.mxu0 %v388
    %444 = vmatmul.bf16.gmra.mxu0 %v59
    %v445 = vpop.f32.mrf.mxu0
    %v446 = vadd.f32 0.0, %v445
    %v447 = vpop.f32.mrf.mxu0
    %v448 = vadd.f32 0.0, %v447
    %449 = vdwg.mxu0
    %450 = vmatpush.bf16.msra.mxu0 %v410
    %451 = vmatpush.bf16.msra.mxu0 %v407
    %452 = vmatpush.bf16.msra.mxu0 %v404
    %453 = vmatpush.bf16.msra.mxu0 %v401
    %454 = vmatpush.bf16.msra.mxu0 %v398
    %455 = vmatpush.bf16.msra.mxu0 %v395
    %456 = vmatpush.bf16.msra.mxu0 %v392
    %457 = vmatpush.bf16.msra.mxu0 %v389
    %458 = vmatmul.bf16.gmra.mxu0 %v59
    %v459 = vpop.f32.mrf.mxu0
    %v460 = vadd.f32 0.0, %v459
    %v461 = vpop.f32.mrf.mxu0
    %v462 = vadd.f32 0.0, %v461
    %463 = vdwg.mxu0
    %464 = vmatpush.bf16.msra.mxu0 %v411
    %465 = vmatpush.bf16.msra.mxu0 %v408
    %466 = vmatpush.bf16.msra.mxu0 %v405
    %467 = vmatpush.bf16.msra.mxu0 %v402
    %468 = vmatpush.bf16.msra.mxu0 %v399
    %469 = vmatpush.bf16.msra.mxu0 %v396
    %470 = vmatpush.bf16.msra.mxu0 %v393
    %471 = vmatpush.bf16.msra.mxu0 %v390
    %472 = vmatmul.bf16.gmra.mxu0 %v59
    %v473 = vpop.f32.mrf.mxu0
    %v474 = vadd.f32 0.0, %v473
    %v475 = vpop.f32.mrf.mxu0
    %v476 = vadd.f32 0.0, %v475
    %477 = vdwg.mxu0
    %v478 = vadd.f32 %v244, %v446
    %v479 = vadd.f32 %v246, %v448
    %v480 = vxor.u32 %v478, 2147483648
    %v481 = vxor.u32 %v479, 2147483648
    %v482 = vmul.f32 %v480, 1.442695
    %v483 = vpow.pop %v482
    %v484 = vmul.f32 %v481, 1.442695
    %v485 = vpow.pop %v484
    %v486 = vadd.f32 %v483, 1.0
    %v487 = vadd.f32 %v485, 1.0
    %v488 = vrcp.pop %v486
    %v489 = vmul.f32 %v486, %v488
    %v490 = vsub.f32 1.0, %v489
    %v491 = vmul.f32 %v488, %v490
    %v492 = vadd.f32 %v488, %v491
    %vm493 = vweird.f32 %v486
    %vm494 = vweird.f32 %v488
    %vm495 = vmor %vm493, %vm494
    %v496 = vsel %vm495, %v488, %v492
    %v497 = vand.u32 2147483647, %v486
    %vm498 = vcmp.eq.f32.partialorder %v497, 8.507059e+37
    %v499 = vand.u32 %v486, 2147483648
    %v500 = vor.u32 1.1754944e-38, %v499
    %v501 = vsel %vm498, %v500, %v496
    %v502 = vmul.f32 1.0, %v501
    %v503 = vrcp.pop %v487
    %v504 = vmul.f32 %v487, %v503
    %v505 = vsub.f32 1.0, %v504
    %v506 = vmul.f32 %v503, %v505
    %v507 = vadd.f32 %v503, %v506
    %vm508 = vweird.f32 %v487
    %vm509 = vweird.f32 %v503
    %vm510 = vmor %vm508, %vm509
    %v511 = vsel %vm510, %v503, %v507
    %v512 = vand.u32 2147483647, %v487
    %vm513 = vcmp.eq.f32.partialorder %v512, 8.507059e+37
    %v514 = vand.u32 %v487, 2147483648
    %v515 = vor.u32 1.1754944e-38, %v514
    %v516 = vsel %vm513, %v515, %v511
    %v517 = vmul.f32 1.0, %v516
    %v518 = vadd.f32 %v258, %v460
    %v519 = vadd.f32 %v260, %v462
    %v520 = vxor.u32 %v518, 2147483648
    %v521 = vxor.u32 %v519, 2147483648
    %v522 = vmul.f32 %v520, 1.442695
    %v523 = vpow.pop %v522
    %v524 = vmul.f32 %v521, 1.442695
    %v525 = vpow.pop %v524
    %v526 = vadd.f32 %v523, 1.0
    %v527 = vadd.f32 %v525, 1.0
    %v528 = vrcp.pop %v526
    %v529 = vmul.f32 %v526, %v528
    %v530 = vsub.f32 1.0, %v529
    %v531 = vmul.f32 %v528, %v530
    %v532 = vadd.f32 %v528, %v531
    %vm533 = vweird.f32 %v526
    %vm534 = vweird.f32 %v528
    %vm535 = vmor %vm533, %vm534
    %v536 = vsel %vm535, %v528, %v532
    %v537 = vand.u32 2147483647, %v526
    %vm538 = vcmp.eq.f32.partialorder %v537, 8.507059e+37
    %v539 = vand.u32 %v526, 2147483648
    %v540 = vor.u32 1.1754944e-38, %v539
    %v541 = vsel %vm538, %v540, %v536
    %v542 = vmul.f32 1.0, %v541
    %v543 = vrcp.pop %v527
    %v544 = vmul.f32 %v527, %v543
    %v545 = vsub.f32 1.0, %v544
    %v546 = vmul.f32 %v543, %v545
    %v547 = vadd.f32 %v543, %v546
    %vm548 = vweird.f32 %v527
    %vm549 = vweird.f32 %v543
    %vm550 = vmor %vm548, %vm549
    %v551 = vsel %vm550, %v543, %v547
    %v552 = vand.u32 2147483647, %v527
    %vm553 = vcmp.eq.f32.partialorder %v552, 8.507059e+37
    %v554 = vand.u32 %v527, 2147483648
    %v555 = vor.u32 1.1754944e-38, %v554
    %v556 = vsel %vm553, %v555, %v551
    %v557 = vmul.f32 1.0, %v556
    %v558 = vld [vmem:[%s5] sm:$0x1]
    %v560 = vperm.slane %v558, 0
    %v562 = vadd.f32 %v474, %v560
    %v563 = vadd.f32 %v476, %v560
    %v564 = vmul.f32 %v502, %v562
    %v565 = vmul.f32 %v517, %v563
    %v566 = vadd.f32 %v272, %v564
    %v567 = vadd.f32 %v274, %v565
    %v568 = vtanh.pop %v566
    %v569 = vtanh.pop %v567
    %v570 = vsub.f32 1.0, %v542
    %v571 = vsub.f32 1.0, %v557
    %v572 = vmul.f32 %v570, %v568
    %v573 = vmul.f32 %v571, %v569
    %v574 = vmul.f32 %v542, %v57
    %v575 = vmul.f32 %v557, %v58
    %v576 = vadd.f32 %v572, %v574
    %v577 = vadd.f32 %v573, %v575
    %578 = vst [vmem:[%s6] sm:$0xff] %v576
    %579 = vst [vmem:[%s6 + $0x8] sm:$0xff] %v577
    // Predicated region
    $region34: #{gru_cell_pallas.1} parent=1 // pred_check
      _
    $region35: #{gru_cell_pallas.1} parent=1 // pred_check_branch
      %581 = sbr.rel (0) target = $region37
    $region36: #{gru_cell_pallas.1} parent=1 // pred_region
      _
    $region37: #{gru_cell_pallas.1} parent=1 // pred_fallthru
      _
    // Predicated region
    $region38: #{gru_cell_pallas.1} parent=1 // pred_check
      _
    $region39: #{gru_cell_pallas.1} parent=1 // pred_check_branch
      %583 = sbr.rel (0) target = $region41
    $region40: #{gru_cell_pallas.1} parent=1 // pred_region
      _
    $region41: #{gru_cell_pallas.1} parent=1 // pred_fallthru
      _
    %584 = vsyncpa [#allocation3], 1
    %585 = vsyncpa [#allocation5], 1

</llo_original>
